<compile_context>
chip_gen: v7x
topology: tpu7x:2x2x1
jax: 0.10.0
libtpu: 0.0.40
codegen_flags: <defaults>
</compile_context>

<pallas_src>
import functools

import jax
import jax.numpy as jnp
from jax.experimental import pallas as pl
from jax.experimental.pallas import tpu as pltpu


def _cdiv(a, b):
    return -(-a // b)


def _margin_loss_kernel(lengths_ref, tgt_ref, out_ref, *,
                        m_pos, m_neg, lam_sqrt, islogit, k, c):
    x = lengths_ref[...].astype(jnp.float32)              # (tb, Cf) native-dtype load
    if islogit:
        x = jnp.exp(x)                                     # EUP slot (hidden)
    cf = x.shape[1]

    # Per-lane target lane index (as f32; values are small exact integers).
    lane = jax.lax.broadcasted_iota(jnp.int32, (1, cf), 1).astype(jnp.float32)
    t = tgt_ref[...]                                       # (tb, k) f32 target lanes
    if k > 1:
        # Replicate each group's target across its C lanes with one tiny MXU
        # matmul against a constant 0/1 replication matrix (rep[p, j] = 1 iff
        # lane j belongs to group p).  MXU is otherwise idle -> ~free.
        base = jax.lax.broadcasted_iota(jnp.int32, (k, cf), 0) * c
        j = jax.lax.broadcasted_iota(jnp.int32, (k, cf), 1)
        rep = jnp.logical_and(j >= base, j < base + c).astype(jnp.float32)
        t_rep = jnp.dot(t, rep, preferred_element_type=jnp.float32)   # (tb, Cf)
    else:
        t_rep = t                                          # (tb, 1) broadcasts
    match = t_rep == lane                                  # single VPU compare

    # lambda_ folded before squaring: relu(sqrt(l)*(x-m_neg))^2 == l*relu(x-m_neg)^2
    a = m_pos - x
    b = lam_sqrt * (x - m_neg)
    sel = jnp.maximum(jnp.where(match, a, b), 0.0)
    loss = sel * sel

    # Per-block partial sum: write only row 0 of the (8, Cf) output block; the
    # wrapper ignores the remaining (unwritten) rows.
    out_ref[0:1, :] = jnp.sum(loss, axis=0, keepdims=True)


def margin_loss(lengths, targets, *, m_pos=0.9, m_neg=0.1, lambda_=0.5,
                islogit=True, size_average=True, tile_bytes=4 * 1024 * 1024):
    """Pallas TPU implementation of MarginLoss.forward (1-D targets).

    lengths: float array [B, C] (any float dtype; streamed in native dtype)
    targets: int array [B] of class indices
    returns: scalar float32 loss
    """
    if targets.ndim != 1:
        # TODO(synk): 2-D (two-labels-per-sample) target branch not implemented.
        raise NotImplementedError("2-D targets path is not supported")
    B, C = lengths.shape

    # Lane-dense row fusion: pack k = 128 // C original rows per fused row
    # (works for any C < 128; Cf = k*C <= 128 lanes).
    k = (128 // C) if C < 128 else 1
    Cf = k * C
    G = _cdiv(B, k)                        # fused rows

    # Tile size: ~tile_bytes per (lengths + targets) tile, rows a multiple of
    # MIN_TB; force >= 2 blocks when there is enough work (v7x has 2 TCs).
    MIN_TB = 32
    itemsize = jnp.dtype(lengths.dtype).itemsize
    row_bytes = Cf * itemsize + k * 4      # lengths row + f32 target-lane row
    if G <= 2 * MIN_TB:
        tb = G                             # single block; full-extent dims are OK
    else:
        budget = max(MIN_TB, (tile_bytes // row_bytes) // MIN_TB * MIN_TB)
        half = _cdiv(_cdiv(G, 2), MIN_TB) * MIN_TB
        tb = min(budget, half)
    num_blocks = _cdiv(G, tb)
    G_pad = num_blocks * tb
    B_pad = G_pad * k

    # Pad with values that contribute exactly zero loss -> no in-kernel mask.
    # (islogit: exp(very negative) -> 0 <= m_neg; else: pad <= m_neg.)
    pad_val = -1.0e4 if islogit else float(m_neg) - 1.0

    x = lengths
    tgt = targets.astype(jnp.int32)
    if B_pad != B:
        x = jnp.pad(x, ((0, B_pad - B), (0, 0)), constant_values=pad_val)
        tgt = jnp.pad(tgt, (0, B_pad - B))
    x_f = x.reshape(G_pad, Cf)             # contiguous row-major reshape -> free

    offs = (jnp.arange(k, dtype=jnp.int32) * C)[None, :]
    lane_idx = tgt.reshape(G_pad, k) + offs        # target lane within fused row
    if B_pad != B:
        valid = (jnp.arange(B_pad) < B).reshape(G_pad, k)
        lane_idx = jnp.where(valid, lane_idx, -1)  # padded rows never match
    tgt_f = lane_idx.astype(jnp.float32)           # exact small integers

    kernel = functools.partial(
        _margin_loss_kernel,
        m_pos=float(m_pos), m_neg=float(m_neg),
        lam_sqrt=float(lambda_) ** 0.5,
        islogit=bool(islogit), k=k, c=C)

    block_bytes = tb * Cf * itemsize + tb * k * 4 + 8 * Cf * 4
    vmem_limit = int(min(max(4 * block_bytes, 16 * 1024 * 1024),
                         64 * 1024 * 1024))

    cost = pl.CostEstimate(
        flops=int((8 + 2 * k) * G_pad * Cf),
        transcendentals=int(G_pad * Cf) if islogit else 0,
        bytes_accessed=int(G_pad * Cf * itemsize + G_pad * k * 4
                           + num_blocks * 8 * Cf * 4))

    partials = pl.pallas_call(
        kernel,
        out_shape=jax.ShapeDtypeStruct((num_blocks * 8, Cf), jnp.float32),
        grid=(num_blocks,),
        in_specs=[
            pl.BlockSpec((tb, Cf), lambda i: (i, 0)),   # lengths (native dtype)
            pl.BlockSpec((tb, k), lambda i: (i, 0)),    # fused target lanes (f32)
        ],
        out_specs=pl.BlockSpec((8, Cf), lambda i: (i, 0)),   # per-block partials
        compiler_params=pltpu.CompilerParams(
            dimension_semantics=("parallel",),          # independent blocks
            vmem_limit_bytes=vmem_limit),
        cost_estimate=cost,
    )(x_f, tgt_f)

    # Only row 0 of each 8-row output block was written.
    total = jnp.sum(partials.reshape(num_blocks, 8, Cf)[:, 0, :])
    if size_average:
        total = total * (1.0 / (B * C))
    return total


def _reference(lengths, targets, *, m_pos=0.9, m_neg=0.1, lambda_=0.5,
               islogit=True, size_average=True):
    x = lengths.astype(jnp.float32)
    if islogit:
        x = jnp.exp(x)
    t = jax.nn.one_hot(targets, x.shape[1], dtype=jnp.float32)
    losses = (t * jnp.maximum(m_pos - x, 0.0) ** 2
              + lambda_ * (1.0 - t) * jnp.maximum(x - m_neg, 0.0) ** 2)
    return losses.mean() if size_average else losses.sum()


if __name__ == "__main__":
    key = jax.random.PRNGKey(0)
    k1, k2, k3, k4, k5, k6, k7, k8 = jax.random.split(key, 8)

    # 1) Capsule-net-like shape: batch=8, 16 classes, f32, mean reduction.
    B, C = 8, 16
    lengths = jax.random.uniform(k1, (B, C), dtype=jnp.float32,
                                 minval=-3.0, maxval=0.0)
    targets = jax.random.randint(k2, (B,), 0, C, dtype=jnp.int32)
    out = jax.block_until_ready(margin_loss(lengths, targets,
                                            islogit=True, size_average=True))
    ref = _reference(lengths, targets, islogit=True, size_average=True)
    assert jnp.allclose(out, ref, rtol=1e-5, atol=1e-6), (out, ref)

    # 2) Ragged batch (padded rows), sum reduction, bf16 streamed natively.
    B2, C2 = 10, 16
    lengths2 = jax.random.uniform(k3, (B2, C2), dtype=jnp.float32,
                                  minval=-3.0, maxval=0.0).astype(jnp.bfloat16)
    targets2 = jax.random.randint(k4, (B2,), 0, C2, dtype=jnp.int32)
    out2 = jax.block_until_ready(
        margin_loss(lengths2, targets2, islogit=True, size_average=False))
    ref2 = _reference(lengths2.astype(jnp.float32), targets2,
                      islogit=True, size_average=False)
    assert jnp.allclose(out2, ref2, rtol=1e-4, atol=1e-5), (out2, ref2)

    # 3) Non-divisor class count (generalized lane fusion) + islogit=False path.
    B3, C3 = 9, 10
    lengths3 = jax.random.uniform(k5, (B3, C3), dtype=jnp.float32,
                                  minval=0.0, maxval=1.0)
    targets3 = jax.random.randint(k6, (B3,), 0, C3, dtype=jnp.int32)
    out3 = jax.block_until_ready(
        margin_loss(lengths3, targets3, islogit=False, size_average=True))
    ref3 = _reference(lengths3, targets3, islogit=False, size_average=True)
    assert jnp.allclose(out3, ref3, rtol=1e-5, atol=1e-6), (out3, ref3)

    # 4) C >= 128 (k == 1, no fusion / no matmul path).
    B4, C4 = 4, 128
    lengths4 = jax.random.uniform(k7, (B4, C4), dtype=jnp.float32,
                                  minval=-3.0, maxval=0.0)
    targets4 = jax.random.randint(k8, (B4,), 0, C4, dtype=jnp.int32)
    out4 = jax.block_until_ready(
        margin_loss(lengths4, targets4, islogit=True, size_average=True))
    ref4 = _reference(lengths4, targets4, islogit=True, size_average=True)
    assert jnp.allclose(out4, ref4, rtol=1e-5, atol=1e-6), (out4, ref4)

    print("KERNEL_OK")
</pallas_src>

<mosaic_0001>
module attributes {stable_mosaic.version = 11 : i64} {
  func.func @_margin_loss_kernel(%arg0: i32, %arg1: memref<1x128xf32, #tpu.memory_space<vmem>>, %arg2: memref<1x8xf32, #tpu.memory_space<vmem>>, %arg3: memref<8x128xf32, #tpu.memory_space<vmem>>) attributes {dimension_semantics = [#tpu.dimension_semantics<parallel>], iteration_bounds = array<i64: 1>, scalar_prefetch = 0 : i64, scratch_operands = 0 : i64, tpu.core_type = #tpu.core_type<tc>, window_params = [{transform_indices = @transform_0, window_bounds = array<i64: 1, 128>}, {transform_indices = @transform_1, window_bounds = array<i64: 1, 8>}, {transform_indices = @transform_2, window_bounds = array<i64: 8, 128>}]} {
    %c0 = arith.constant 0 : index
    %c0_0 = arith.constant 0 : index
    %0 = vector.load %arg1[%c0, %c0_0] : memref<1x128xf32, #tpu.memory_space<vmem>>, vector<1x128xf32>
    %1 = math.exp %0 : vector<1x128xf32>
    %2 = tpu.iota {dimensions = array<i32: 1>} : vector<1x128xi32>
    %3 = arith.sitofp %2 : vector<1x128xi32> to vector<1x128xf32>
    %c0_1 = arith.constant 0 : index
    %c0_2 = arith.constant 0 : index
    %4 = vector.load %arg2[%c0_1, %c0_2] : memref<1x8xf32, #tpu.memory_space<vmem>>, vector<1x8xf32>
    %5 = tpu.iota {dimensions = array<i32: 0>} : vector<8x128xi32>
    %c16_i32 = arith.constant 16 : i32
    %6 = vector.broadcast %c16_i32 : i32 to vector<8x128xi32>
    %7 = arith.muli %5, %6 : vector<8x128xi32>
    %8 = tpu.iota {dimensions = array<i32: 1>} : vector<8x128xi32>
    %9 = arith.cmpi sge, %8, %7 : vector<8x128xi32>
    %c16_i32_3 = arith.constant 16 : i32
    %10 = vector.broadcast %c16_i32_3 : i32 to vector<8x128xi32>
    %11 = arith.addi %7, %10 : vector<8x128xi32>
    %12 = arith.cmpi slt, %8, %11 : vector<8x128xi32>
    %13 = arith.andi %9, %12 : vector<8x128xi1>
    %14 = arith.extui %13 : vector<8x128xi1> to vector<8x128xi32>
    %15 = arith.sitofp %14 : vector<8x128xi32> to vector<8x128xf32>
    %cst = arith.constant dense<0.000000e+00> : vector<1x128xf32>
    %16 = tpu.matmul %4, %15, %cst {dimension_numbers = #tpu.dot_dimension_numbers<[1], [0], [0], [1], [0, 0, 1, 1], [], []>} : vector<1x8xf32>, vector<8x128xf32>, vector<1x128xf32> -> vector<1x128xf32>
    %17 = arith.cmpf oeq, %16, %3 : vector<1x128xf32>
    %cst_4 = arith.constant 0.899999976 : f32
    %18 = vector.broadcast %cst_4 : f32 to vector<1x128xf32>
    %19 = arith.subf %18, %1 : vector<1x128xf32>
    %cst_5 = arith.constant 1.000000e-01 : f32
    %20 = vector.broadcast %cst_5 : f32 to vector<1x128xf32>
    %21 = arith.subf %1, %20 : vector<1x128xf32>
    %cst_6 = arith.constant 0.707106769 : f32
    %22 = vector.broadcast %cst_6 : f32 to vector<1x128xf32>
    %23 = arith.mulf %22, %21 : vector<1x128xf32>
    %24 = arith.select %17, %19, %23 : vector<1x128xi1>, vector<1x128xf32>
    %cst_7 = arith.constant 0.000000e+00 : f32
    %25 = vector.broadcast %cst_7 : f32 to vector<1x128xf32>
    %26 = arith.maximumf %24, %25 : vector<1x128xf32>
    %27 = arith.mulf %26, %26 : vector<1x128xf32>
    %cst_8 = arith.constant dense<0.000000e+00> : vector<128xf32>
    %28 = vector.multi_reduction <add>, %27, %cst_8 [0] : vector<1x128xf32> to vector<128xf32>
    %29 = vector.shape_cast %28 : vector<128xf32> to vector<1x128xf32>
    %c0_9 = arith.constant 0 : index
    %c0_10 = arith.constant 0 : index
    %30 = vector.load %arg3[%c0_9, %c0_10] : memref<8x128xf32, #tpu.memory_space<vmem>>, vector<1x128xf32>
    tpu.vector_store %arg3[%c0_9, %c0_10], %29 {strides = array<i32>} : memref<8x128xf32, #tpu.memory_space<vmem>>, vector<1x128xf32>,
    return
  }
  func.func @transform_0(%arg0: i32) -> (i32, i32) {
    %c0_i32 = arith.constant 0 : i32
    %c0_i32_0 = arith.constant 0 : i32
    return %arg0, %c0_i32 : i32, i32
  }
  func.func @transform_1(%arg0: i32) -> (i32, i32) {
    %c0_i32 = arith.constant 0 : i32
    %c0_i32_0 = arith.constant 0 : i32
    return %arg0, %c0_i32 : i32, i32
  }
  func.func @transform_2(%arg0: i32) -> (i32, i32) {
    %c0_i32 = arith.constant 0 : i32
    %c0_i32_0 = arith.constant 0 : i32
    return %arg0, %c0_i32 : i32, i32
  }
}

</mosaic_0001>

<llo_original>
// kernel: tpu_custom_call.1
$region0: #{tpu_custom_call.1}
  #allocation0 [shape = 'u32[]', space=smem, size = 0x4, offset = 0x4, fixed_abs, tag = 'smem constant byte address 0x4 - core index']
  #allocation1 [shape = 'u32[144,128]{1,0:T(1,128)}', space=vmem, size = 0x12000, scoped, tag = 'internal scratch']
  %s0 = inlined_call_operand.hbm [shape: f32[1,128], index: 0, kind: input, shape index: {}]
  %s1 = inlined_call_operand.vmem [shape: f32[1,8], index: 1, kind: input, shape index: {}]
  %s2 = inlined_call_operand.hbm [shape: f32[8,128], index: 2, kind: output, shape index: {}]
  %s3 = sld [smem:[#allocation0]]
  $region22: #{tpu_custom_call.1} parent=0
    _
  %s5 = ssub.s32 1, %s3
  %s6 = scalar_select 0, %s5, %s3
  $region1: #{tpu_custom_call.1} parent=0
    #allocation2 [shape = 'u8[512]{0}', space=vmem, size = 0x400, scoped, tag = 'input window, operand 0, single buffered']
    #allocation3 [shape = 's32[1]{0}', space=sflag, size = 0x4, scoped, tag = 'scoped memory for tpu_custom_call.1']
    #allocation4 [shape = 's32[1]{0}', space=sflag, size = 0x4, scoped, tag = 'scoped memory for tpu_custom_call.1']
    #allocation5 [shape = 'u8[4096]{0}', space=vmem, size = 0x1000, scoped, tag = 'output window, operand 0, single buffered']
    %7 = vsyncpa [#allocation3], 0
    %8 = vsyncpa [#allocation4], 0
    // Predicated region
    $region2: #{tpu_custom_call.1} parent=1 // pred_check
      _
    $region3: #{tpu_custom_call.1} parent=1 // pred_check_branch
      %10 = sbr.rel (0) target = $region5
    $region4: #{tpu_custom_call.1} parent=1 // pred_region
      %s12 = ssub.s32 16, 16
      %13 = vsyncadd [#allocation3], %s12
      %s15 = sshll.u32 [#allocation2], 4
      %s16 = int_to_ptr.vmem [resolvable:$true] %s15
      %18 = dma.hbm_to_vmem [thread:$0]  %s0, 16, %s16, [#allocation3]
    $region5: #{tpu_custom_call.1} parent=1 // pred_fallthru
      _
    // Predicated region
    $region6: #{tpu_custom_call.1} parent=1 // pred_check
      _
    $region7: #{tpu_custom_call.1} parent=1 // pred_check_branch
      %20 = sbr.rel (0) target = $region9
    $region8: #{tpu_custom_call.1} parent=1 // pred_region
      _
    $region9: #{tpu_custom_call.1} parent=1 // pred_fallthru
      _
    // Predicated region
    $region10: #{tpu_custom_call.1} parent=1 // pred_check
      _
    $region11: #{tpu_custom_call.1} parent=1 // pred_check_branch
      %22 = sbr.rel (0) target = $region13
    $region12: #{tpu_custom_call.1} parent=1 // pred_region
      %23 = dma.done [#allocation3], 16
    $region13: #{tpu_custom_call.1} parent=1 // pred_fallthru
      _
    %v24 = vld [vmem:[#allocation2] sm:$0x1]
    %v25 = vmul.f32 %v24, 1.442695
    %v26 = vpow.pop %v25
    %v27 = vlaneseq
    %v28 = vand.u32 %v27, 127
    %v29 = vcvt.s32.f32 %v28
    %v30 = vld [vmem:[%s1] sm:$0x1]
    %v31 = vlaneseq
    %v32 = vshrl.u32 %v31, 7
    %v33 = vmul.u32 %v32, 16
    %vm34 = vcmp.ge.s32.totalorder %v28, %v33
    %v35 = vadd.s32 %v33, 16
    %vm36 = vcmp.lt.s32.totalorder %v28, %v35
    %vm37 = vmand %vm34, %vm36
    %v38 = vsel %vm37, 1, 0
    %v39 = vcvt.s32.f32 %v38
    %vm40 = vcmask 64512
    %v42 = vsel %vm40, %v30, 0
    %44 = vmatprep.subr.mxu0 0.0
    %45 = vmatpush1.msra.mxu0 %v39
    %46 = vmatprep.subr.mxu0 0.0
    %47 = vmatpush1.msra.mxu0 0.0
    %48 = vmatprep.subr.mxu0 0.0
    %49 = vmatpush1.msra.mxu0 0.0
    %50 = vmatprep.subr.mxu0 0.0
    %51 = vmatpush1.msra.mxu0 0.0
    %52 = vmatprep.subr.mxu0 0.0
    %53 = vmatpush1.msra.mxu0 0.0
    %54 = vmatprep.subr.mxu0 0.0
    %55 = vmatpush1.msra.mxu0 0.0
    %56 = vmatprep.subr.mxu0 0.0
    %57 = vmatpush1.msra.mxu0 0.0
    %58 = vmatprep.subr.mxu0 0.0
    %59 = vmatpush1.msra.mxu0 0.0
    %60 = vmatprep.subr.mxu0 0.0
    %61 = vmatpush1.msra.mxu0 0.0
    %62 = vmatprep.subr.mxu0 0.0
    %63 = vmatpush1.msra.mxu0 0.0
    %64 = vmatprep.subr.mxu0 0.0
    %65 = vmatpush1.msra.mxu0 0.0
    %66 = vmatprep.subr.mxu0 0.0
    %67 = vmatpush1.msra.mxu0 0.0
    %68 = vmatprep.subr.mxu0 0.0
    %69 = vmatpush1.msra.mxu0 0.0
    %70 = vmatprep.subr.mxu0 0.0
    %71 = vmatpush1.msra.mxu0 0.0
    %72 = vmatprep.subr.mxu0 0.0
    %73 = vmatpush1.msra.mxu0 0.0
    %74 = vmatprep.subr.mxu0 0.0
    %75 = vmatpush1.msra.mxu0 0.0
    %76 = vmatprep.subr.mxu0 0.0
    %77 = vmatpush1.msra.mxu0 0.0
    %78 = vmatprep.subr.mxu0 0.0
    %79 = vmatpush1.msra.mxu0 0.0
    %80 = vmatprep.subr.mxu0 0.0
    %81 = vmatpush1.msra.mxu0 0.0
    %82 = vmatprep.subr.mxu0 0.0
    %83 = vmatpush1.msra.mxu0 0.0
    %84 = vmatprep.subr.mxu0 0.0
    %85 = vmatpush1.msra.mxu0 0.0
    %86 = vmatprep.subr.mxu0 0.0
    %87 = vmatpush1.msra.mxu0 0.0
    %88 = vmatprep.subr.mxu0 0.0
    %89 = vmatpush1.msra.mxu0 0.0
    %90 = vmatprep.subr.mxu0 0.0
    %91 = vmatpush1.msra.mxu0 0.0
    %92 = vmatprep.subr.mxu0 0.0
    %93 = vmatpush1.msra.mxu0 0.0
    %94 = vmatprep.subr.mxu0 0.0
    %95 = vmatpush1.msra.mxu0 0.0
    %96 = vmatprep.subr.mxu0 0.0
    %97 = vmatpush1.msra.mxu0 0.0
    %98 = vmatprep.subr.mxu0 0.0
    %99 = vmatpush1.msra.mxu0 0.0
    %100 = vmatprep.subr.mxu0 0.0
    %101 = vmatpush1.msra.mxu0 0.0
    %102 = vmatprep.subr.mxu0 0.0
    %103 = vmatpush1.msra.mxu0 0.0
    %104 = vmatprep.subr.mxu0 0.0
    %105 = vmatpush1.msra.mxu0 0.0
    %106 = vmatprep.subr.mxu0 0.0
    %107 = vmatpush1.msra.mxu0 0.0
    %108 = vmatprep.mubr.f32.mxu0 0.0
    %109 = vmatmul.mubr.f32.gmra.mrb[0].mxu0 %v42
    %v110 = vpop.f32.mrb[0].mxu0
    %v111 = vadd.f32 0.0, %v110
    %v112 = vpop.f32.mrb[0].mxu0
    %113 = vdwg.mxu0
    %vm114 = vcmp.eq.f32.partialorder %v111, %v29
    %v115 = vsub.f32 0.9, %v26
    %v116 = vsub.f32 %v26, 0.1
    %v117 = vmul.f32 %v116, 0.70710677
    %v118 = vsel %vm114, %v115, %v117
    %v119 = vmax.f32 %v118, 0.0
    %v120 = vmul.f32 %v119, %v119
    %v121 = vadd.f32 %v120, 0.0
    %122 = vst [vmem:[#allocation5] sm:$0x1] %v121
    // Predicated region
    $region14: #{tpu_custom_call.1} parent=1 // pred_check
      _
    $region15: #{tpu_custom_call.1} parent=1 // pred_check_branch
      %124 = sbr.rel (0) target = $region17
    $region16: #{tpu_custom_call.1} parent=1 // pred_region
      %s126 = ssub.s32 128, 128
      %127 = vsyncadd [#allocation4], %s126
      %s129 = sshll.u32 [#allocation5], 4
      %s130 = int_to_ptr.vmem [resolvable:$true] %s129
      %132 = dma.vmem_to_hbm [thread:$0]  %s130, 128, %s2, [#allocation4]
    $region17: #{tpu_custom_call.1} parent=1 // pred_fallthru
      _
    // Predicated region
    $region18: #{tpu_custom_call.1} parent=1 // pred_check
      _
    $region19: #{tpu_custom_call.1} parent=1 // pred_check_branch
      %134 = sbr.rel (0) target = $region21
    $region20: #{tpu_custom_call.1} parent=1 // pred_region
      %135 = dma.done [#allocation4], 128
    $region21: #{tpu_custom_call.1} parent=1 // pred_fallthru
      _
    %136 = vsyncpa [#allocation3], 1
    %137 = vsyncpa [#allocation4], 1

</llo_original>
